<compile_context>
chip_gen: v7x
topology: tpu7x:2x2x1
jax: 0.10.0
libtpu: 0.0.40
codegen_flags: <defaults>
</compile_context>

<pallas_src>
import functools
import math

import jax
import jax.numpy as jnp
from jax import lax
from jax.experimental import pallas as pl
from jax.experimental.pallas import tpu as pltpu


# ---------------------------------------------------------------------------
# Kernels
# ---------------------------------------------------------------------------
def _fused_lm_head_kernel(x_ref, wd_ref, pbias_ref, wdec_ref, obias_ref,
                          o_ref, y_ref, *, eps):
    # x_ref:     (tm, H)   activations (mxu_dtype)
    # wd_ref:    (H, H)    dense weight (mxu_dtype, constant index_map)
    # pbias_ref: (3, H)    f32: row0=dense_b, row1=ln_gamma, row2=ln_beta
    # wdec_ref:  (H, tv)   decoder weight tile (mxu_dtype)
    # obias_ref: (1, tv)   f32 output-bias tile
    # o_ref:     (tm, tv)  logits tile (out_dtype)
    # y_ref:     (tm, H)   VMEM scratch holding LN output in MXU dtype

    # dense -> gelu -> LayerNorm only on the first vocab tile of each row
    # block; reuse from VMEM for the remaining vocab tiles (V axis is
    # "arbitrary", so the scratch persists across it).
    @pl.when(pl.program_id(1) == 0)
    def _():
        h = jnp.dot(x_ref[...], wd_ref[...], preferred_element_type=jnp.float32)
        h = h + pbias_ref[0:1, :]
        # exact erf-based gelu (matches pytorch_pretrained_bert.modeling.gelu)
        h = 0.5 * h * (1.0 + lax.erf(h * (1.0 / math.sqrt(2.0))))
        # BertLayerNorm over the last dim.  Padded (all-zero-ish) rows give
        # var=0 -> rsqrt(eps) is large, but it multiplies (h - mu) == 0, so
        # no NaN/Inf is produced and those rows are sliced away anyway.
        mu = jnp.mean(h, axis=-1, keepdims=True)
        var = jnp.mean((h - mu) ** 2, axis=-1, keepdims=True)
        hn = (h - mu) * lax.rsqrt(var + eps)
        y_ref[...] = (hn * pbias_ref[1:2, :] + pbias_ref[2:3, :]).astype(y_ref.dtype)

    o_ref[...] = (
        jnp.dot(y_ref[...], wdec_ref[...], preferred_element_type=jnp.float32)
        + obias_ref[...]
    ).astype(o_ref.dtype)


def _proj_kernel(x_ref, wd_ref, pbias_ref, y_ref, *, eps):
    # Pass 1 of the two-pass path: y = LN(gelu(x @ Wd + b)) in MXU dtype.
    h = jnp.dot(x_ref[...], wd_ref[...], preferred_element_type=jnp.float32)
    h = h + pbias_ref[0:1, :]
    h = 0.5 * h * (1.0 + lax.erf(h * (1.0 / math.sqrt(2.0))))
    mu = jnp.mean(h, axis=-1, keepdims=True)
    var = jnp.mean((h - mu) ** 2, axis=-1, keepdims=True)
    hn = (h - mu) * lax.rsqrt(var + eps)
    y_ref[...] = (hn * pbias_ref[1:2, :] + pbias_ref[2:3, :]).astype(y_ref.dtype)


def _decoder_kernel(y_ref, wdec_ref, obias_ref, o_ref):
    # Pass 2: weight-stationary decoder matmul tile.
    o_ref[...] = (
        jnp.dot(y_ref[...], wdec_ref[...], preferred_element_type=jnp.float32)
        + obias_ref[...]
    ).astype(o_ref.dtype)


# ---------------------------------------------------------------------------
# Host-side helpers
# ---------------------------------------------------------------------------
def _round_up(x, m):
    return (x + m - 1) // m * m


def _vmem_limit(est_bytes):
    # Always set: v5e's scoped default is only 16 MiB and would otherwise be
    # exceeded silently.  Cap at 48 MiB so v7x (64 MiB physical per TC) keeps
    # headroom for Mosaic internal scratch / output double-buffers.
    return int(min(max(est_bytes * 5 // 4, 32 << 20), 48 << 20))


def prepare_lm_head_params(params, *, mxu_dtype=jnp.bfloat16, tv=1024):
    """Cast + vocab-pad the weights ONCE (not per forward call)."""
    H = params["dense_w"].shape[0]
    V = params["decoder_w"].shape[1]
    tv = _round_up(min(tv, _round_up(V, 128)), 128)   # lane-aligned vocab tile
    Vp = _round_up(V, tv)

    decoder_w = params["decoder_w"].astype(mxu_dtype)
    out_bias = params["out_bias"].reshape(1, V).astype(jnp.float32)
    if Vp != V:
        decoder_w = jnp.pad(decoder_w, ((0, 0), (0, Vp - V)))
        out_bias = jnp.pad(out_bias, ((0, 0), (0, Vp - V)))

    # Fold the three small (H,) vectors into one VMEM-resident (3, H) block.
    pbias = jnp.stack(
        [params["dense_b"].reshape(H),
         params["ln_g"].reshape(H),
         params["ln_b"].reshape(H)], axis=0).astype(jnp.float32)

    return {
        "H": H, "V": V, "Vp": Vp, "tv": tv, "mxu_dtype": mxu_dtype,
        "dense_w": params["dense_w"].astype(mxu_dtype),
        "pbias": pbias,
        "decoder_w": decoder_w,
        "out_bias": out_bias,
    }


def roberta_lm_head(features, prep, *, eps=1e-12, tm=512,
                    out_dtype=jnp.float32, two_pass=None, unpad=True):
    """features: [B, S, H] -> logits [B, S, V] (or padded [Tp, Vp] if unpad=False)."""
    B, S, H = features.shape
    assert H == prep["H"], "hidden size mismatch with prepared params"
    mxu_dtype = prep["mxu_dtype"]
    V, Vp, tv = prep["V"], prep["Vp"], prep["tv"]
    T = B * S

    ib = jnp.dtype(mxu_dtype).itemsize
    ob = jnp.dtype(out_dtype).itemsize
    # bf16 packs two rows per sublane -> keep row tiles 16-aligned.
    row_align = 8 if ib >= 4 else 16
    tm = _round_up(max(row_align, min(tm, _round_up(T, row_align))), row_align)
    Tp = _round_up(T, tm)

    x = features.reshape(T, H).astype(mxu_dtype)
    if Tp != T:
        x = jnp.pad(x, ((0, Tp - T), (0, 0)))

    n_rows = Tp // tm
    n_cols = Vp // tv
    if two_pass is None:
        # fused decoder-weight traffic: n_rows * H*Vp
        # two-pass traffic:             H*Vp (decoder once) + (n_cols+2)*Tp*H (y)
        two_pass = (n_rows * H * Vp) > (H * Vp + (n_cols + 2) * Tp * H)

    dense_w, pbias = prep["dense_w"], prep["pbias"]
    decoder_w, out_bias = prep["decoder_w"], prep["out_bias"]

    if not two_pass:
        # ------------------------------------------------------------------
        # Fused path: grid (T blocks, V blocks); decoder restreamed n_rows x.
        # ------------------------------------------------------------------
        cost = pl.CostEstimate(
            flops=2 * Tp * H * H + 2 * Tp * H * Vp,
            transcendentals=Tp * H,
            bytes_accessed=(Tp * H * ib + H * H * ib + 3 * H * 4
                            + n_rows * (H * Vp * ib + Vp * 4)   # decoder restream
                            + Tp * Vp * ob),
        )
        vmem_est = (2 * (tm * H * ib + H * H * ib + 3 * H * 4
                         + H * tv * ib + tv * 4 + tm * tv * ob)
                    + tm * H * ib)
        logits = pl.pallas_call(
            functools.partial(_fused_lm_head_kernel, eps=eps),
            out_shape=jax.ShapeDtypeStruct((Tp, Vp), out_dtype),
            grid_spec=pltpu.PrefetchScalarGridSpec(
                num_scalar_prefetch=0,
                grid=(n_rows, n_cols),
                in_specs=[
                    pl.BlockSpec((tm, H), lambda i, j: (i, 0)),   # x row block
                    # dense_w / pbias: constant index_map -> DMA'd once (the
                    # default pipeline still reserves 2x their VMEM; that is
                    # only a few MiB at bf16 and within budget).
                    pl.BlockSpec((H, H), lambda i, j: (0, 0)),    # dense weight
                    pl.BlockSpec((3, H), lambda i, j: (0, 0)),    # b/gamma/beta
                    pl.BlockSpec((H, tv), lambda i, j: (0, j)),   # decoder tile
                    pl.BlockSpec((1, tv), lambda i, j: (0, j)),   # output bias
                ],
                out_specs=pl.BlockSpec((tm, tv), lambda i, j: (i, j)),
                scratch_shapes=[pltpu.VMEM((tm, H), mxu_dtype)],
            ),
            compiler_params=pltpu.CompilerParams(
                dimension_semantics=("parallel", "arbitrary"),
                vmem_limit_bytes=_vmem_limit(vmem_est)),
            cost_estimate=cost,
        )(x, dense_w, pbias, decoder_w, out_bias)
    else:
        # ------------------------------------------------------------------
        # Two-pass weight-stationary path for large T.
        # Pass 1: y = LN(gelu(x @ Wd + b)) -> HBM in MXU dtype.
        # ------------------------------------------------------------------
        cost1 = pl.CostEstimate(
            flops=2 * Tp * H * H,
            transcendentals=Tp * H,
            bytes_accessed=2 * Tp * H * ib + H * H * ib + 3 * H * 4,
        )
        vmem_est1 = 2 * (2 * tm * H * ib + H * H * ib + 3 * H * 4)
        y = pl.pallas_call(
            functools.partial(_proj_kernel, eps=eps),
            out_shape=jax.ShapeDtypeStruct((Tp, H), mxu_dtype),
            grid_spec=pltpu.PrefetchScalarGridSpec(
                num_scalar_prefetch=0,
                grid=(n_rows,),
                in_specs=[
                    pl.BlockSpec((tm, H), lambda i: (i, 0)),
                    pl.BlockSpec((H, H), lambda i: (0, 0)),
                    pl.BlockSpec((3, H), lambda i: (0, 0)),
                ],
                out_specs=pl.BlockSpec((tm, H), lambda i: (i, 0)),
            ),
            compiler_params=pltpu.CompilerParams(
                dimension_semantics=("parallel",),
                vmem_limit_bytes=_vmem_limit(vmem_est1)),
            cost_estimate=cost1,
        )(x, dense_w, pbias)

        # Pass 2: decoder matmul with the V axis OUTER (slow) and T inner
        # (fast): each (H, tv) decoder tile has a constant index across the
        # inner axis, so the full H*V decoder weight streams from HBM once.
        cost2 = pl.CostEstimate(
            flops=2 * Tp * H * Vp,
            transcendentals=0,
            bytes_accessed=(H * Vp * ib + Vp * 4
                            + n_cols * Tp * H * ib      # y restream
                            + Tp * Vp * ob),
        )
        vmem_est2 = 2 * (tm * H * ib + H * tv * ib + tv * 4 + tm * tv * ob)
        logits = pl.pallas_call(
            _decoder_kernel,
            out_shape=jax.ShapeDtypeStruct((Tp, Vp), out_dtype),
            grid_spec=pltpu.PrefetchScalarGridSpec(
                num_scalar_prefetch=0,
                grid=(n_cols, n_rows),              # V outer, T inner
                in_specs=[
                    pl.BlockSpec((tm, H), lambda j, i: (i, 0)),   # y row block
                    pl.BlockSpec((H, tv), lambda j, i: (0, j)),   # decoder tile
                    pl.BlockSpec((1, tv), lambda j, i: (0, j)),   # output bias
                ],
                out_specs=pl.BlockSpec((tm, tv), lambda j, i: (i, j)),
            ),
            compiler_params=pltpu.CompilerParams(
                dimension_semantics=("parallel", "arbitrary"),
                vmem_limit_bytes=_vmem_limit(vmem_est2)),
            cost_estimate=cost2,
        )(y, decoder_w, out_bias)

    if not unpad:
        # Let the consumer work on the padded (Tp, Vp) buffer (e.g. mask in
        # the loss) to avoid materializing a second full-size logits array.
        return logits
    return logits[:T, :V].reshape(B, S, V)


# ---------------------------------------------------------------------------
# Parameter init & pure-JAX reference (module semantics)
# ---------------------------------------------------------------------------
def init_params(key, hidden_size, vocab_size):
    k1, k2, k3, k4, k5, k6 = jax.random.split(key, 6)
    return {
        # nn.Linear(hidden, hidden)
        "dense_w": jax.random.normal(k1, (hidden_size, hidden_size), jnp.float32) * 0.02,
        "dense_b": jax.random.normal(k2, (hidden_size,), jnp.float32) * 0.02,
        # BertLayerNorm(hidden)
        "ln_g": 1.0 + jax.random.normal(k3, (hidden_size,), jnp.float32) * 0.02,
        "ln_b": jax.random.normal(k4, (hidden_size,), jnp.float32) * 0.02,
        # nn.Linear(hidden, vocab, bias=False)
        "decoder_w": jax.random.normal(k5, (hidden_size, vocab_size), jnp.float32) * 0.02,
        # self.bias = nn.Parameter(torch.zeros(vocab_size)) -- randomized here
        "out_bias": jax.random.normal(k6, (vocab_size,), jnp.float32) * 0.02,
    }


def _reference(features, params, eps=1e-12):
    x = features @ params["dense_w"] + params["dense_b"]
    x = 0.5 * x * (1.0 + lax.erf(x / jnp.sqrt(2.0)))
    mu = jnp.mean(x, axis=-1, keepdims=True)
    var = jnp.mean((x - mu) ** 2, axis=-1, keepdims=True)
    x = (x - mu) / jnp.sqrt(var + eps)
    x = x * params["ln_g"] + params["ln_b"]
    return x @ params["decoder_w"] + params["out_bias"]


if __name__ == "__main__":
    # Small shapes; V deliberately NOT a multiple of 128 to exercise the
    # vocab-padding path (real RoBERTa vocab 50265 isn't either).
    B, S, H, V = 2, 8, 32, 200
    key = jax.random.PRNGKey(0)
    k_feat, k_param = jax.random.split(key)
    features = jax.random.normal(k_feat, (B, S, H), jnp.float32)
    params = init_params(k_param, H, V)

    ref = _reference(features, params)

    # f32 MXU path, fused: tight tolerance.
    prep_f32 = prepare_lm_head_params(params, mxu_dtype=jnp.float32)
    out_f32 = jax.block_until_ready(
        roberta_lm_head(features, prep_f32, two_pass=False))
    assert out_f32.shape == (B, S, V)
    assert jnp.allclose(out_f32, ref, atol=1e-4, rtol=1e-4), "f32 fused mismatch"

    # bf16 MXU path (default), fused: looser tolerance.
    prep_bf16 = prepare_lm_head_params(params)
    out_bf16 = jax.block_until_ready(
        roberta_lm_head(features, prep_bf16, two_pass=False))
    assert jnp.allclose(out_bf16, ref, atol=2e-2, rtol=2e-2), "bf16 fused mismatch"

    # bf16, weight-stationary two-pass path.
    out_2p = jax.block_until_ready(
        roberta_lm_head(features, prep_bf16, two_pass=True))
    assert jnp.allclose(out_2p, ref, atol=2e-2, rtol=2e-2), "bf16 two-pass mismatch"

    print("KERNEL_OK")
</pallas_src>

<mosaic_0001>
module attributes {stable_mosaic.version = 11 : i64} {
  func.func @_fused_lm_head_kernel(%arg0: i32, %arg1: i32, %arg2: memref<16x32xf32, #tpu.memory_space<vmem>>, %arg3: memref<32x32xf32, #tpu.memory_space<vmem>>, %arg4: memref<3x32xf32, #tpu.memory_space<vmem>>, %arg5: memref<32x256xf32, #tpu.memory_space<vmem>>, %arg6: memref<1x256xf32, #tpu.memory_space<vmem>>, %arg7: memref<16x256xf32, #tpu.memory_space<vmem>>, %arg8: memref<16x32xf32, #tpu.memory_space<vmem>>) attributes {dimension_semantics = [#tpu.dimension_semantics<parallel>, #tpu.dimension_semantics<arbitrary>], iteration_bounds = array<i64: 1, 1>, scalar_prefetch = 0 : i64, scratch_operands = 1 : i64, tpu.core_type = #tpu.core_type<tc>, window_params = [{transform_indices = @transform_0, window_bounds = array<i64: 16, 32>}, {pipeline_mode = #tpu.pipeline_mode<synchronous>, transform_indices = @transform_1, window_bounds = array<i64: 32, 32>}, {pipeline_mode = #tpu.pipeline_mode<synchronous>, transform_indices = @transform_2, window_bounds = array<i64: 3, 32>}, {transform_indices = @transform_3, window_bounds = array<i64: 32, 256>}, {transform_indices = @transform_4, window_bounds = array<i64: 1, 256>}, {transform_indices = @transform_5, window_bounds = array<i64: 16, 256>}]} {
    %c0_i32 = arith.constant 0 : i32
    %0 = arith.cmpi eq, %arg1, %c0_i32 : i32
    %1 = arith.extui %0 : i1 to i32
    %c0_i32_0 = arith.constant 0 : i32
    %2 = arith.cmpi ne, %1, %c0_i32_0 : i32
    scf.if %2 {
      %c0_8 = arith.constant 0 : index
      %c0_9 = arith.constant 0 : index
      %10 = vector.load %arg2[%c0_8, %c0_9] : memref<16x32xf32, #tpu.memory_space<vmem>>, vector<16x32xf32>
      %c0_10 = arith.constant 0 : index
      %c0_11 = arith.constant 0 : index
      %11 = vector.load %arg3[%c0_10, %c0_11] : memref<32x32xf32, #tpu.memory_space<vmem>>, vector<32x32xf32>
      %cst_12 = arith.constant dense<0.000000e+00> : vector<16x32xf32>
      %12 = tpu.matmul %10, %11, %cst_12 {dimension_numbers = #tpu.dot_dimension_numbers<[1], [0], [0], [1], [0, 0, 1, 1], [], []>} : vector<16x32xf32>, vector<32x32xf32>, vector<16x32xf32> -> vector<16x32xf32>
      %c0_13 = arith.constant 0 : index
      %c0_14 = arith.constant 0 : index
      %13 = vector.load %arg4[%c0_13, %c0_14] : memref<3x32xf32, #tpu.memory_space<vmem>>, vector<1x32xf32>
      %14 = vector.broadcast %13 : vector<1x32xf32> to vector<16x32xf32>
      %15 = arith.addf %12, %14 : vector<16x32xf32>
      %cst_15 = arith.constant 5.000000e-01 : f32
      %16 = vector.broadcast %cst_15 : f32 to vector<16x32xf32>
      %17 = arith.mulf %16, %15 : vector<16x32xf32>
      %cst_16 = arith.constant 0.707106769 : f32
      %18 = vector.broadcast %cst_16 : f32 to vector<16x32xf32>
      %19 = arith.mulf %15, %18 : vector<16x32xf32>
      %20 = math.erf %19 : vector<16x32xf32>
      %cst_17 = arith.constant 1.000000e+00 : f32
      %21 = vector.broadcast %cst_17 : f32 to vector<16x32xf32>
      %22 = arith.addf %21, %20 : vector<16x32xf32>
      %23 = arith.mulf %17, %22 : vector<16x32xf32>
      %cst_18 = arith.constant dense<0.000000e+00> : vector<16xf32>
      %24 = vector.multi_reduction <add>, %23, %cst_18 [1] : vector<16x32xf32> to vector<16xf32>
      %25 = vector.shape_cast %24 : vector<16xf32> to vector<16x1xf32>
      %cst_19 = arith.constant 3.200000e+01 : f32
      %26 = vector.broadcast %cst_19 : f32 to vector<16x1xf32>
      %27 = arith.divf %25, %26 : vector<16x1xf32>
      %28 = vector.broadcast %27 : vector<16x1xf32> to vector<16x32xf32>
      %29 = arith.subf %23, %28 : vector<16x32xf32>
      %30 = arith.mulf %29, %29 : vector<16x32xf32>
      %cst_20 = arith.constant dense<0.000000e+00> : vector<16xf32>
      %31 = vector.multi_reduction <add>, %30, %cst_20 [1] : vector<16x32xf32> to vector<16xf32>
      %32 = vector.shape_cast %31 : vector<16xf32> to vector<16x1xf32>
      %cst_21 = arith.constant 3.200000e+01 : f32
      %33 = vector.broadcast %cst_21 : f32 to vector<16x1xf32>
      %34 = arith.divf %32, %33 : vector<16x1xf32>
      %35 = vector.broadcast %27 : vector<16x1xf32> to vector<16x32xf32>
      %36 = arith.subf %23, %35 : vector<16x32xf32>
      %cst_22 = arith.constant 9.99999996E-13 : f32
      %37 = vector.broadcast %cst_22 : f32 to vector<16x1xf32>
      %38 = arith.addf %34, %37 : vector<16x1xf32>
      %39 = math.rsqrt %38 : vector<16x1xf32>
      %40 = vector.broadcast %39 : vector<16x1xf32> to vector<16x32xf32>
      %41 = arith.mulf %36, %40 : vector<16x32xf32>
      %c1 = arith.constant 1 : index
      %c0_23 = arith.constant 0 : index
      %42 = vector.load %arg4[%c1, %c0_23] : memref<3x32xf32, #tpu.memory_space<vmem>>, vector<1x32xf32>
      %43 = vector.broadcast %42 : vector<1x32xf32> to vector<16x32xf32>
      %44 = arith.mulf %41, %43 : vector<16x32xf32>
      %c2 = arith.constant 2 : index
      %c0_24 = arith.constant 0 : index
      %45 = vector.load %arg4[%c2, %c0_24] : memref<3x32xf32, #tpu.memory_space<vmem>>, vector<1x32xf32>
      %46 = vector.broadcast %45 : vector<1x32xf32> to vector<16x32xf32>
      %47 = arith.addf %44, %46 : vector<16x32xf32>
      %c0_25 = arith.constant 0 : index
      %c0_26 = arith.constant 0 : index
      %48 = vector.load %arg8[%c0_25, %c0_26] : memref<16x32xf32, #tpu.memory_space<vmem>>, vector<16x32xf32>
      tpu.vector_store %arg8[%c0_25, %c0_26], %47 {strides = array<i32>} : memref<16x32xf32, #tpu.memory_space<vmem>>, vector<16x32xf32>,
    } else {
    }
    %c0 = arith.constant 0 : index
    %c0_1 = arith.constant 0 : index
    %3 = vector.load %arg8[%c0, %c0_1] : memref<16x32xf32, #tpu.memory_space<vmem>>, vector<16x32xf32>
    %c0_2 = arith.constant 0 : index
    %c0_3 = arith.constant 0 : index
    %4 = vector.load %arg5[%c0_2, %c0_3] : memref<32x256xf32, #tpu.memory_space<vmem>>, vector<32x256xf32>
    %cst = arith.constant dense<0.000000e+00> : vector<16x256xf32>
    %5 = tpu.matmul %3, %4, %cst {dimension_numbers = #tpu.dot_dimension_numbers<[1], [0], [0], [1], [0, 0, 1, 1], [], []>} : vector<16x32xf32>, vector<32x256xf32>, vector<16x256xf32> -> vector<16x256xf32>
    %c0_4 = arith.constant 0 : index
    %c0_5 = arith.constant 0 : index
    %6 = vector.load %arg6[%c0_4, %c0_5] : memref<1x256xf32, #tpu.memory_space<vmem>>, vector<1x256xf32>
    %7 = vector.broadcast %6 : vector<1x256xf32> to vector<16x256xf32>
    %8 = arith.addf %5, %7 : vector<16x256xf32>
    %c0_6 = arith.constant 0 : index
    %c0_7 = arith.constant 0 : index
    %9 = vector.load %arg7[%c0_6, %c0_7] : memref<16x256xf32, #tpu.memory_space<vmem>>, vector<16x256xf32>
    tpu.vector_store %arg7[%c0_6, %c0_7], %8 {strides = array<i32>} : memref<16x256xf32, #tpu.memory_space<vmem>>, vector<16x256xf32>,
    return
  }
  func.func @transform_0(%arg0: i32, %arg1: i32) -> (i32, i32) {
    %c0_i32 = arith.constant 0 : i32
    %c0_i32_0 = arith.constant 0 : i32
    return %arg0, %c0_i32 : i32, i32
  }
  func.func @transform_1(%arg0: i32, %arg1: i32) -> (i32, i32) {
    %c0_i32 = arith.constant 0 : i32
    %c0_i32_0 = arith.constant 0 : i32
    %c0_i32_1 = arith.constant 0 : i32
    return %c0_i32, %c0_i32_0 : i32, i32
  }
  func.func @transform_2(%arg0: i32, %arg1: i32) -> (i32, i32) {
    %c0_i32 = arith.constant 0 : i32
    %c0_i32_0 = arith.constant 0 : i32
    %c0_i32_1 = arith.constant 0 : i32
    return %c0_i32, %c0_i32_0 : i32, i32
  }
  func.func @transform_3(%arg0: i32, %arg1: i32) -> (i32, i32) {
    %c0_i32 = arith.constant 0 : i32
    %c0_i32_0 = arith.constant 0 : i32
    return %c0_i32, %arg1 : i32, i32
  }
  func.func @transform_4(%arg0: i32, %arg1: i32) -> (i32, i32) {
    %c0_i32 = arith.constant 0 : i32
    %c0_i32_0 = arith.constant 0 : i32
    return %c0_i32, %arg1 : i32, i32
  }
  func.func @transform_5(%arg0: i32, %arg1: i32) -> (i32, i32) {
    %c0_i32 = arith.constant 0 : i32
    return %arg0, %arg1 : i32, i32
  }
}

</mosaic_0001>

<llo_original>
// kernel: tpu_custom_call.1
$region0: #{tpu_custom_call.1}
  #allocation0 [shape = 'u32[]', space=smem, size = 0x4, offset = 0x4, fixed_abs, tag = 'smem constant byte address 0x4 - core index']
  #allocation1 [shape = 'u32[144,128]{1,0:T(1,128)}', space=vmem, size = 0x12000, scoped, tag = 'internal scratch']
  #allocation2 [shape = 'f32[16,32]{1,0:T(8,128)}', space=vmem, size = 0x2000, scoped, tag = 'scratch operand']
  %s0 = inlined_call_operand.hbm [shape: f32[16,32], index: 0, kind: input, shape index: {}]
  %s1 = inlined_call_operand.hbm [shape: f32[32,32], index: 1, kind: input, shape index: {}]
  %s2 = inlined_call_operand.vmem [shape: f32[3,32], index: 2, kind: input, shape index: {}]
  %s3 = inlined_call_operand.hbm [shape: f32[32,256], index: 3, kind: input, shape index: {}]
  %s4 = inlined_call_operand.vmem [shape: f32[1,256], index: 4, kind: input, shape index: {}]
  %s5 = inlined_call_operand.hbm [shape: f32[16,256], index: 5, kind: output, shape index: {}]
  %s6 = sld [smem:[#allocation0]]
  $region46: #{tpu_custom_call.1} parent=0
    _
  %s8 = ssub.s32 1, %s6
  %s9 = scalar_select 0, %s8, %s6
  $region1: #{tpu_custom_call.1} parent=0
    #allocation3 [shape = 'u8[8192]{0}', space=vmem, size = 0x2000, scoped, tag = 'input window, operand 0, single buffered']
    #allocation4 [shape = 's32[1]{0}', space=sflag, size = 0x4, scoped, tag = 'scoped memory for tpu_custom_call.1']
    #allocation5 [shape = 's32[1]{0}', space=sflag, size = 0x4, scoped, tag = 'scoped memory for tpu_custom_call.1']
    #allocation6 [shape = 'u8[16384]{0}', space=vmem, size = 0x4000, scoped, tag = 'input window, operand 1, single buffered']
    #allocation7 [shape = 's32[1]{0}', space=sflag, size = 0x4, scoped, tag = 'scoped memory for tpu_custom_call.1']
    #allocation8 [shape = 'u8[32768]{0}', space=vmem, size = 0x8000, scoped, tag = 'input window, operand 3, single buffered']
    #allocation9 [shape = 'u8[16384]{0}', space=vmem, size = 0x4000, scoped, tag = 'output window, operand 0, single buffered']
    %10 = vsyncpa [#allocation4], 0
    %11 = vsyncpa [#allocation7], 0
    %12 = vsyncpa [#allocation5], 0
    // Predicated region
    $region2: #{tpu_custom_call.1} parent=1 // pred_check
      _
    $region3: #{tpu_custom_call.1} parent=1 // pred_check_branch
      %14 = sbr.rel (0) target = $region5
    $region4: #{tpu_custom_call.1} parent=1 // pred_region
      %s16 = ssub.s32 256, 256
      %17 = vsyncadd [#allocation4], %s16
      %s18 = sshll.u32 [#allocation3], 4
      %s19 = int_to_ptr.vmem [resolvable:$true] %s18
      %24 = dma.hbm_to_vmem [thread:$0]  %s0, 256, %s19, [#allocation4], 128, 128, 8
    $region5: #{tpu_custom_call.1} parent=1 // pred_fallthru
      _
    // Predicated region
    $region6: #{tpu_custom_call.1} parent=1 // pred_check
      _
    $region7: #{tpu_custom_call.1} parent=1 // pred_check_branch
      %26 = sbr.rel (0) target = $region9
    $region8: #{tpu_custom_call.1} parent=1 // pred_region
      %s28 = ssub.s32 512, 512
      %29 = vsyncadd [#allocation7], %s28
      %s30 = sshll.u32 [#allocation6], 4
      %s31 = int_to_ptr.vmem [resolvable:$true] %s30
      %36 = dma.hbm_to_vmem [thread:$0]  %s1, 512, %s31, [#allocation7], 128, 128, 8
    $region9: #{tpu_custom_call.1} parent=1 // pred_fallthru
      _
    // Predicated region
    $region10: #{tpu_custom_call.1} parent=1 // pred_check
      _
    $region11: #{tpu_custom_call.1} parent=1 // pred_check_branch
      %38 = sbr.rel (0) target = $region13
    $region12: #{tpu_custom_call.1} parent=1 // pred_region
      _
    $region13: #{tpu_custom_call.1} parent=1 // pred_fallthru
      _
    // Predicated region
    $region14: #{tpu_custom_call.1} parent=1 // pred_check
      _
    $region15: #{tpu_custom_call.1} parent=1 // pred_check_branch
      %40 = sbr.rel (0) target = $region17
    $region16: #{tpu_custom_call.1} parent=1 // pred_region
      %s42 = ssub.s32 1024, 1024
      %43 = vsyncadd [#allocation7], %s42
      %s44 = sshll.u32 [#allocation8], 4
      %s45 = int_to_ptr.vmem [resolvable:$true] %s44
      %50 = dma.hbm_to_vmem [thread:$0]  %s3, 1024, %s45, [#allocation7], 256, 256, 16
    $region17: #{tpu_custom_call.1} parent=1 // pred_fallthru
      _
    // Predicated region
    $region18: #{tpu_custom_call.1} parent=1 // pred_check
      _
    $region19: #{tpu_custom_call.1} parent=1 // pred_check_branch
      %52 = sbr.rel (0) target = $region21
    $region20: #{tpu_custom_call.1} parent=1 // pred_region
      _
    $region21: #{tpu_custom_call.1} parent=1 // pred_fallthru
      _
    // Predicated region
    $region22: #{tpu_custom_call.1} parent=1 // pred_check
      _
    $region23: #{tpu_custom_call.1} parent=1 // pred_check_branch
      %54 = sbr.rel (0) target = $region25
    $region24: #{tpu_custom_call.1} parent=1 // pred_region
      %55 = dma.done [#allocation4], 256
    $region25: #{tpu_custom_call.1} parent=1 // pred_fallthru
      _
    // Predicated region
    $region26: #{tpu_custom_call.1} parent=1 // pred_check
      _
    $region27: #{tpu_custom_call.1} parent=1 // pred_check_branch
      %57 = sbr.rel (0) target = $region29
    $region28: #{tpu_custom_call.1} parent=1 // pred_region
      %58 = dma.done [#allocation7], 512
    $region29: #{tpu_custom_call.1} parent=1 // pred_fallthru
      _
    // Predicated region
    $region30: #{tpu_custom_call.1} parent=1 // pred_check
      _
    $region31: #{tpu_custom_call.1} parent=1 // pred_check_branch
      %60 = sbr.rel (0) target = $region33
    $region32: #{tpu_custom_call.1} parent=1 // pred_region
      %61 = dma.done [#allocation7], 1024
    $region33: #{tpu_custom_call.1} parent=1 // pred_fallthru
      _
    %p62 = scmp.eq.s32.totalorder 0, 0
    // Predicated region
    $region34: #{tpu_custom_call.1} parent=1 // pred_check
      %p63 = pneg %p62
    $region35: #{tpu_custom_call.1} parent=1 // pred_check_branch
      %65 = sbr.rel (%p63) target = $region37
    $region36: #{tpu_custom_call.1} parent=1 // pred_region
      %v66 = vld [vmem:[#allocation3] sm:$0xff]
      %v67 = vld [vmem:[#allocation3 + $0x8] sm:$0xff]
      %v68 = vld [vmem:[#allocation6] sm:$0xff]
      %v69 = vld [vmem:[#allocation6 + $0x8] sm:$0xff]
      %v70 = vld [vmem:[#allocation6 + $0x10] sm:$0xff]
      %v71 = vld [vmem:[#allocation6 + $0x18] sm:$0xff]
      %v72 = vld [vmem:[%s2] sm:$0x1]
      %v73 = vlaneseq
      %v74 = vshrl.u32 %v73, 7
      %v75 = vsub.s32 0, %v74
      %v76 = vrot.slane %v72, %v75
      %vm77 = vcmask 261120
      %v79 = vsel %vm77, %v66, 0
      %v82 = vsel %vm77, %v67, 0
      %84 = vmatprep.subr.mxu0 0.0
      %85 = vmatpush1.msra.mxu0 %v68
      %86 = vmatprep.subr.mxu0 0.0
      %87 = vmatpush1.msra.mxu0 %v69
      %88 = vmatprep.subr.mxu0 0.0
      %89 = vmatpush1.msra.mxu0 %v70
      %90 = vmatprep.subr.mxu0 0.0
      %91 = vmatpush1.msra.mxu0 %v71
      %92 = vmatprep.subr.mxu0 0.0
      %93 = vmatpush1.msra.mxu0 0.0
      %94 = vmatprep.subr.mxu0 0.0
      %95 = vmatpush1.msra.mxu0 0.0
      %96 = vmatprep.subr.mxu0 0.0
      %97 = vmatpush1.msra.mxu0 0.0
      %98 = vmatprep.subr.mxu0 0.0
      %99 = vmatpush1.msra.mxu0 0.0
      %100 = vmatprep.subr.mxu0 0.0
      %101 = vmatpush1.msra.mxu0 0.0
      %102 = vmatprep.subr.mxu0 0.0
      %103 = vmatpush1.msra.mxu0 0.0
      %104 = vmatprep.subr.mxu0 0.0
      %105 = vmatpush1.msra.mxu0 0.0
      %106 = vmatprep.subr.mxu0 0.0
      %107 = vmatpush1.msra.mxu0 0.0
      %108 = vmatprep.subr.mxu0 0.0
      %109 = vmatpush1.msra.mxu0 0.0
      %110 = vmatprep.subr.mxu0 0.0
      %111 = vmatpush1.msra.mxu0 0.0
      %112 = vmatprep.subr.mxu0 0.0
      %113 = vmatpush1.msra.mxu0 0.0
      %114 = vmatprep.subr.mxu0 0.0
      %115 = vmatpush1.msra.mxu0 0.0
      %116 = vmatprep.subr.mxu0 0.0
      %117 = vmatpush1.msra.mxu0 0.0
      %118 = vmatprep.subr.mxu0 0.0
      %119 = vmatpush1.msra.mxu0 0.0
      %120 = vmatprep.subr.mxu0 0.0
      %121 = vmatpush1.msra.mxu0 0.0
      %122 = vmatprep.subr.mxu0 0.0
      %123 = vmatpush1.msra.mxu0 0.0
      %124 = vmatprep.subr.mxu0 0.0
      %125 = vmatpush1.msra.mxu0 0.0
      %126 = vmatprep.subr.mxu0 0.0
      %127 = vmatpush1.msra.mxu0 0.0
      %128 = vmatprep.subr.mxu0 0.0
      %129 = vmatpush1.msra.mxu0 0.0
      %130 = vmatprep.subr.mxu0 0.0
      %131 = vmatpush1.msra.mxu0 0.0
      %132 = vmatprep.subr.mxu0 0.0
      %133 = vmatpush1.msra.mxu0 0.0
      %134 = vmatprep.subr.mxu0 0.0
      %135 = vmatpush1.msra.mxu0 0.0
      %136 = vmatprep.subr.mxu0 0.0
      %137 = vmatpush1.msra.mxu0 0.0
      %138 = vmatprep.subr.mxu0 0.0
      %139 = vmatpush1.msra.mxu0 0.0
      %140 = vmatprep.subr.mxu0 0.0
      %141 = vmatpush1.msra.mxu0 0.0
      %142 = vmatprep.subr.mxu0 0.0
      %143 = vmatpush1.msra.mxu0 0.0
      %144 = vmatprep.subr.mxu0 0.0
      %145 = vmatpush1.msra.mxu0 0.0
      %146 = vmatprep.subr.mxu0 0.0
      %147 = vmatpush1.msra.mxu0 0.0
      %148 = vmatprep.mubr.f32.mxu0 0.0
      %149 = vmatmul.mubr.f32.gmra.mrb[0].mxu0 %v79
      %v150 = vpop.f32.mrb[0].mxu0
      %v151 = vadd.f32 %v76, %v150
      %v152 = vpop.f32.mrb[0].mxu0
      %153 = vmatprep.mubr.f32.mxu0 0.0
      %154 = vmatmul.mubr.f32.gmra.mrb[0].mxu0 %v82
      %v155 = vpop.f32.mrb[0].mxu0
      %v156 = vadd.f32 %v76, %v155
      %v157 = vpop.f32.mrb[0].mxu0
      %158 = vdwg.mxu0
      %v159 = vmul.f32 %v151, 0.5
      %v160 = vmul.f32 %v156, 0.5
      %v161 = vmul.f32 %v151, 0.70710677
      %v162 = vmul.f32 %v156, 0.70710677
      %v163 = verf.f32.pop %v161
      %v164 = verf.f32.pop %v162
      %v165 = vadd.f32 %v163, 1.0
      %v166 = vadd.f32 %v164, 1.0
      %v167 = vmul.f32 %v159, %v165
      %v168 = vmul.f32 %v160, %v166
      %v169 = vsel %vm77, %v167, 0.0
      %170 = vadd.xlane.f32.xlu0 %v169
      %v171 = vpop.xlane.xlu0 %170
      %v172 = vsel %vm77, %v168, 0.0
      %173 = vadd.xlane.f32.xlu0 %v172
      %v174 = vpop.xlane.xlu0 %173
      %v175 = vrcp.pop 32.0
      %v176 = vmul.f32 %v171, %v175
      %v177 = vmul.f32 %v174, %v175
      %v178 = vsub.f32 %v167, %v176
      %v179 = vsub.f32 %v168, %v177
      %v180 = vmul.f32 %v178, %v178
      %v181 = vmul.f32 %v179, %v179
      %v182 = vsel %vm77, %v180, 0.0
      %183 = vadd.xlane.f32.xlu0 %v182
      %v184 = vpop.xlane.xlu0 %183
      %v185 = vsel %vm77, %v181, 0.0
      %186 = vadd.xlane.f32.xlu0 %v185
      %v187 = vpop.xlane.xlu0 %186
      %v188 = vmul.f32 %v184, %v175
      %v189 = vmul.f32 %v187, %v175
      %v190 = vadd.f32 %v188, 1e-12
      %v191 = vadd.f32 %v189, 1e-12
      %v192 = vrsqrt.pop %v190
      %v193 = vrsqrt.pop %v191
      %v194 = vmul.f32 %v178, %v192
      %v195 = vmul.f32 %v179, %v193
      %v196 = vld [vmem:[%s2 + $0x1] sm:$0x1]
      %v197 = vlaneseq
      %v198 = vshrl.u32 %v197, 7
      %v199 = vsub.s32 0, %v198
      %v200 = vrot.slane %v196, %v199
      %v201 = vmul.f32 %v194, %v200
      %v202 = vmul.f32 %v195, %v200
      %v203 = vld [vmem:[%s2 + $0x2] sm:$0x1]
      %v204 = vlaneseq
      %v205 = vshrl.u32 %v204, 7
      %v206 = vsub.s32 0, %v205
      %v207 = vrot.slane %v203, %v206
      %v208 = vadd.f32 %v201, %v207
      %v209 = vadd.f32 %v202, %v207
      %210 = vst.msk [vmem:[#allocation2] sm:$0xff] %vm77, %v208
      %211 = vst.msk [vmem:[#allocation2 + $0x8] sm:$0xff] %vm77, %v209
    $region37: #{tpu_custom_call.1} parent=1 // pred_fallthru
      _
    %v212 = vld [vmem:[#allocation2] sm:$0xff]
    %v213 = vld [vmem:[#allocation2 + $0x8] sm:$0xff]
    %v214 = vld [vmem:[#allocation8] sm:$0xff]
    %v215 = vld [vmem:[#allocation8 + $0x8] sm:$0xff]
    %v216 = vld [vmem:[#allocation8 + $0x10] sm:$0xff]
    %v217 = vld [vmem:[#allocation8 + $0x18] sm:$0xff]
    %v218 = vld [vmem:[#allocation8 + $0x20] sm:$0xff]
    %v219 = vld [vmem:[#allocation8 + $0x28] sm:$0xff]
    %v220 = vld [vmem:[#allocation8 + $0x30] sm:$0xff]
    %v221 = vld [vmem:[#allocation8 + $0x38] sm:$0xff]
    %v222 = vld [vmem:[%s4] sm:$0x3]
    %v224 = vlaneseq
    %v225 = vshrl.u32 %v224, 7
    %v226 = vsub.s32 0, %v225
    %v227 = vrot.slane %v222, %v226
    %v228 = vlaneseq
    %v229 = vshrl.u32 %v228, 7
    %v230 = vsub.s32 1, %v229
    %v231 = vrot.slane %v222, %v230
    %vm234 = vcmask 261120
    %v236 = vsel %vm234, %v212, 0
    %v239 = vsel %vm234, %v213, 0
    %241 = vmatprep.subr.mxu0 %v215
    %242 = vmatpush1.msra.mxu0 %v214
    %243 = vmatprep.subr.mxu0 %v217
    %244 = vmatpush1.msra.mxu0 %v216
    %245 = vmatprep.subr.mxu0 %v219
    %246 = vmatpush1.msra.mxu0 %v218
    %247 = vmatprep.subr.mxu0 %v221
    %248 = vmatpush1.msra.mxu0 %v220
    %249 = vmatprep.subr.mxu0 0.0
    %250 = vmatpush1.msra.mxu0 0.0
    %251 = vmatprep.subr.mxu0 0.0
    %252 = vmatpush1.msra.mxu0 0.0
    %253 = vmatprep.subr.mxu0 0.0
    %254 = vmatpush1.msra.mxu0 0.0
    %255 = vmatprep.subr.mxu0 0.0
    %256 = vmatpush1.msra.mxu0 0.0
    %257 = vmatprep.subr.mxu0 0.0
    %258 = vmatpush1.msra.mxu0 0.0
    %259 = vmatprep.subr.mxu0 0.0
    %260 = vmatpush1.msra.mxu0 0.0
    %261 = vmatprep.subr.mxu0 0.0
    %262 = vmatpush1.msra.mxu0 0.0
    %263 = vmatprep.subr.mxu0 0.0
    %264 = vmatpush1.msra.mxu0 0.0
    %265 = vmatprep.subr.mxu0 0.0
    %266 = vmatpush1.msra.mxu0 0.0
    %267 = vmatprep.subr.mxu0 0.0
    %268 = vmatpush1.msra.mxu0 0.0
    %269 = vmatprep.subr.mxu0 0.0
    %270 = vmatpush1.msra.mxu0 0.0
    %271 = vmatprep.subr.mxu0 0.0
    %272 = vmatpush1.msra.mxu0 0.0
    %273 = vmatprep.subr.mxu0 0.0
    %274 = vmatpush1.msra.mxu0 0.0
    %275 = vmatprep.subr.mxu0 0.0
    %276 = vmatpush1.msra.mxu0 0.0
    %277 = vmatprep.subr.mxu0 0.0
    %278 = vmatpush1.msra.mxu0 0.0
    %279 = vmatprep.subr.mxu0 0.0
    %280 = vmatpush1.msra.mxu0 0.0
    %281 = vmatprep.subr.mxu0 0.0
    %282 = vmatpush1.msra.mxu0 0.0
    %283 = vmatprep.subr.mxu0 0.0
    %284 = vmatpush1.msra.mxu0 0.0
    %285 = vmatprep.subr.mxu0 0.0
    %286 = vmatpush1.msra.mxu0 0.0
    %287 = vmatprep.subr.mxu0 0.0
    %288 = vmatpush1.msra.mxu0 0.0
    %289 = vmatprep.subr.mxu0 0.0
    %290 = vmatpush1.msra.mxu0 0.0
    %291 = vmatprep.subr.mxu0 0.0
    %292 = vmatpush1.msra.mxu0 0.0
    %293 = vmatprep.subr.mxu0 0.0
    %294 = vmatpush1.msra.mxu0 0.0
    %295 = vmatprep.subr.mxu0 0.0
    %296 = vmatpush1.msra.mxu0 0.0
    %297 = vmatprep.subr.mxu0 0.0
    %298 = vmatpush1.msra.mxu0 0.0
    %299 = vmatprep.subr.mxu0 0.0
    %300 = vmatpush1.msra.mxu0 0.0
    %301 = vmatprep.subr.mxu0 0.0
    %302 = vmatpush1.msra.mxu0 0.0
    %303 = vmatprep.subr.mxu0 0.0
    %304 = vmatpush1.msra.mxu0 0.0
    %305 = vmatprep.mubr.f32.mxu0 0.0
    %306 = vmatmul.mubr.f32.gmra.mrb[0].mxu0 %v236
    %v307 = vpop.f32.mrb[0].mxu0
    %v308 = vadd.f32 %v227, %v307
    %v309 = vpop.f32.mrb[0].mxu0
    %v310 = vadd.f32 %v231, %v309
    %311 = vmatprep.mubr.f32.mxu0 0.0
    %312 = vmatmul.mubr.f32.gmra.mrb[0].mxu0 %v239
    %v313 = vpop.f32.mrb[0].mxu0
    %v314 = vadd.f32 %v227, %v313
    %v315 = vpop.f32.mrb[0].mxu0
    %v316 = vadd.f32 %v231, %v315
    %317 = vdwg.mxu0
    %318 = vst [vmem:[#allocation9] sm:$0xff] %v308
    %319 = vst [vmem:[#allocation9 + $0x8] sm:$0xff] %v310
    %320 = vst [vmem:[#allocation9 + $0x10] sm:$0xff] %v314
    %321 = vst [vmem:[#allocation9 + $0x18] sm:$0xff] %v316
    // Predicated region
    $region38: #{tpu_custom_call.1} parent=1 // pred_check
      _
    $region39: #{tpu_custom_call.1} parent=1 // pred_check_branch
      %323 = sbr.rel (0) target = $region41
    $region40: #{tpu_custom_call.1} parent=1 // pred_region
      %s325 = ssub.s32 512, 512
      %326 = vsyncadd [#allocation5], %s325
      %s327 = sshll.u32 [#allocation9], 4
      %s328 = int_to_ptr.vmem [resolvable:$true] %s327
      %333 = dma.vmem_to_hbm [thread:$0]  %s328, 512, %s5, [#allocation5], 256, 256, 16
    $region41: #{tpu_custom_call.1} parent=1 // pred_fallthru
      _
    // Predicated region
    $region42: #{tpu_custom_call.1} parent=1 // pred_check
      _
    $region43: #{tpu_custom_call.1} parent=1 // pred_check_branch
      %335 = sbr.rel (0) target = $region45
    $region44: #{tpu_custom_call.1} parent=1 // pred_region
      %336 = dma.done [#allocation5], 512
    $region45: #{tpu_custom_call.1} parent=1 // pred_fallthru
      _
    %337 = vsyncpa [#allocation4], 1
    %338 = vsyncpa [#allocation7], 1
    %339 = vsyncpa [#allocation5], 1

</llo_original>
